<compile_context>
chip_gen: v5e
topology: v5e:2x2
jax: 0.10.0
libtpu: 0.0.40
codegen_flags: <defaults>
</compile_context>

<pallas_src>
import jax
import jax.numpy as jnp
from jax.experimental import pallas as pl
from jax.experimental.pallas import tpu as pltpu


def mlp_kernel(x_ref,
               w1_ref, b1_ref,
               w2_ref, b2_ref,
               w3_ref, b3_ref,
               w4_ref, b4_ref,
               w5_ref, b5_ref,
               out_ref):
    """Whole-MLP forward for one batch tile, fully resident in VMEM.

    x arrives f32 (no wrapper-side cast); it is cast to the bf16 MXU operand
    dtype in-kernel.  Accumulation, bias add and ReLU stay in float32.
    """
    x = x_ref[...].astype(jnp.bfloat16)

    # fc1 + ReLU   (dropout -> identity in eval mode)
    h = jnp.dot(x, w1_ref[...], preferred_element_type=jnp.float32)
    h = jnp.maximum(h + b1_ref[...], 0.0)

    # fc2 + ReLU
    h = jnp.dot(h.astype(jnp.bfloat16), w2_ref[...],
                preferred_element_type=jnp.float32)
    h = jnp.maximum(h + b2_ref[...], 0.0)

    # fc3 + ReLU
    h = jnp.dot(h.astype(jnp.bfloat16), w3_ref[...],
                preferred_element_type=jnp.float32)
    h = jnp.maximum(h + b3_ref[...], 0.0)

    # fc4 + ReLU
    h = jnp.dot(h.astype(jnp.bfloat16), w4_ref[...],
                preferred_element_type=jnp.float32)
    h = jnp.maximum(h + b4_ref[...], 0.0)

    # fc_out (logits, no activation)
    logits = jnp.dot(h.astype(jnp.bfloat16), w5_ref[...],
                     preferred_element_type=jnp.float32) + b5_ref[...]
    out_ref[...] = logits.astype(out_ref.dtype)


def _round_up(x, m):
    return ((x + m - 1) // m) * m


def _choose_tiling(B, *, max_tile=1024, num_cores=2, sublane=8):
    """Pick (tile_b, padded_B).

    Large batches: grid-step count is a multiple of num_cores (v7x has 2 TCs;
    "parallel" semantics shards the batch axis across them) and each tile is
    at most max_tile rows.  Small batches: a single full-extent tile rounded
    up to the sublane multiple.  The wrapper zero-pads the batch to padded_B.
    """
    if B >= num_cores * 128 or B > max_tile:
        steps = max(num_cores, pl.cdiv(B, max_tile))
        steps = _round_up(steps, num_cores)
        tile = _round_up(pl.cdiv(B, steps), sublane)
    else:
        steps = 1
        tile = _round_up(B, sublane)
    return tile, tile * steps


def prepare_params(params):
    """One-time parameter prep: weights (already (in, out)) -> bf16 MXU
    operands; biases -> (1, out) float32 so they broadcast inside the kernel."""
    return {name: (w.astype(jnp.bfloat16),
                   b.reshape(1, -1).astype(jnp.float32))
            for name, (w, b) in params.items()}


def mlp_predict_adj(x, prepared_params, *, tile_b=None, max_tile=1024,
                    out_dtype=jnp.float32):
    """Run the MLPPredictAdj forward pass via a single fused Pallas kernel.

    x: [B, input_size] float32 (streamed into the kernel as-is).
    prepared_params: output of prepare_params() — bf16 (in,out) weights,
                     (1,out) f32 biases.
    """
    B, in_size = x.shape
    (w1, b1), (w2, b2), (w3, b3), (w4, b4), (w5, b5) = (
        prepared_params[k] for k in ("fc1", "fc2", "fc3", "fc4", "fc_out"))
    out_size = w5.shape[1]

    if tile_b is None:
        tile_b, padded_B = _choose_tiling(B, max_tile=max_tile)
    else:
        assert tile_b % 8 == 0, "tile_b must be a multiple of 8 (sublane tiling)"
        padded_B = _round_up(B, tile_b)

    if padded_B != B:
        # Pad the batch instead of shrinking the tile: padded rows are sliced
        # off the output, so their (nonzero-after-bias) values never escape.
        x = jnp.pad(x, ((0, padded_B - B), (0, 0)))

    grid = (padded_B // tile_b,)

    # --- cost estimate (helps XLA schedule the custom call) -----------------
    ws = (w1, w2, w3, w4, w5)
    bs = (b1, b2, b3, b4, b5)
    const_bytes = (sum(w.size * w.dtype.itemsize for w in ws)
                   + sum(b.size * b.dtype.itemsize for b in bs))
    flops = 2 * padded_B * sum(w.shape[0] * w.shape[1] for w in ws)
    bytes_accessed = (padded_B * in_size * x.dtype.itemsize
                      + padded_B * out_size * jnp.dtype(out_dtype).itemsize
                      + const_bytes)
    cost = pl.CostEstimate(flops=flops, transcendentals=0,
                           bytes_accessed=bytes_accessed)

    # --- VMEM guard (matters if tiles / feature widths are pushed large) ----
    max_width = max(in_size, out_size, *(w.shape[1] for w in ws))
    x_tile_bytes = tile_b * in_size * x.dtype.itemsize
    out_tile_bytes = tile_b * out_size * jnp.dtype(out_dtype).itemsize
    inter_bytes = 6 * tile_b * max_width * 4          # f32 intermediates, headroom
    needed = 2 * (x_tile_bytes + out_tile_bytes) + 2 * const_bytes + inter_bytes
    vmem_limit = int(min(64 * 1024 * 1024, max(2 * needed, 32 * 1024 * 1024)))

    def const_spec(arr):
        # Weights / biases: same full block at every grid step; Pallas skips
        # the re-fetch when the block index does not change across steps.
        return pl.BlockSpec(arr.shape, lambda i: (0, 0))

    in_specs = [
        pl.BlockSpec((tile_b, in_size), lambda i: (i, 0)),   # x tiled over batch
        const_spec(w1), const_spec(b1),
        const_spec(w2), const_spec(b2),
        const_spec(w3), const_spec(b3),
        const_spec(w4), const_spec(b4),
        const_spec(w5), const_spec(b5),
    ]
    out_specs = pl.BlockSpec((tile_b, out_size), lambda i: (i, 0))

    out = pl.pallas_call(
        mlp_kernel,
        out_shape=jax.ShapeDtypeStruct((padded_B, out_size), out_dtype),
        grid_spec=pltpu.PrefetchScalarGridSpec(
            num_scalar_prefetch=0,
            grid=grid,
            in_specs=in_specs,
            out_specs=out_specs,
        ),
        compiler_params=pltpu.CompilerParams(
            dimension_semantics=("parallel",),
            vmem_limit_bytes=vmem_limit),
        cost_estimate=cost,
    )(x, w1, b1, w2, b2, w3, b3, w4, b4, w5, b5)

    return out[:B] if padded_B != B else out


def init_params(key, input_size, hidden_channels, output_size):
    """Deterministic parameter init (uniform, PyTorch-Linear-like fan_in scaling).

    Returns f32 weights already transposed to (in, out)."""
    sizes = [
        ("fc1", input_size, hidden_channels),
        ("fc2", hidden_channels, hidden_channels),
        ("fc3", hidden_channels, hidden_channels // 2),
        ("fc4", hidden_channels // 2, hidden_channels // 4),
        ("fc_out", hidden_channels // 4, output_size),
    ]
    params = {}
    for name, fan_in, fan_out in sizes:
        key, kw, kb = jax.random.split(key, 3)
        bound = 1.0 / (fan_in ** 0.5)
        w = jax.random.uniform(kw, (fan_in, fan_out), jnp.float32, -bound, bound)
        b = jax.random.uniform(kb, (fan_out,), jnp.float32, -bound, bound)
        params[name] = (w, b)
    return params


def mlp_reference(x, params):
    """Pure-JAX reference using the same bf16-operand / f32-accumulate recipe."""
    h = x.astype(jnp.bfloat16)
    for name in ("fc1", "fc2", "fc3", "fc4"):
        w, b = params[name]
        y = jnp.dot(h, w.astype(jnp.bfloat16),
                    preferred_element_type=jnp.float32) + b
        h = jnp.maximum(y, 0.0).astype(jnp.bfloat16)
    w, b = params["fc_out"]
    return jnp.dot(h, w.astype(jnp.bfloat16),
                   preferred_element_type=jnp.float32) + b


if __name__ == "__main__":
    # Small demo: 128-wide adjacency-row features, hidden_channels = 128
    # (module default), output_size = input_size.
    input_size = 128
    hidden_channels = 128
    output_size = input_size

    key = jax.random.PRNGKey(0)
    key, kx1, kx2 = jax.random.split(key, 3)
    params = init_params(key, input_size, hidden_channels, output_size)
    prepared = prepare_params(params)

    # Case 1: aligned batch (256 rows -> 2 grid steps of 128, one per v7x TC).
    B1 = 256
    x1 = jax.random.normal(kx1, (B1, input_size), jnp.float32)
    out1 = jax.block_until_ready(mlp_predict_adj(x1, prepared))
    ref1 = mlp_reference(x1, params)
    assert out1.shape == (B1, output_size)
    assert jnp.allclose(out1, ref1, atol=1e-2, rtol=1e-2), (
        float(jnp.max(jnp.abs(out1 - ref1))))

    # Case 2: awkward batch (100 rows) -> padded batch path, output sliced back.
    B2 = 100
    x2 = jax.random.normal(kx2, (B2, input_size), jnp.float32)
    out2 = jax.block_until_ready(mlp_predict_adj(x2, prepared))
    ref2 = mlp_reference(x2, params)
    assert out2.shape == (B2, output_size)
    assert jnp.allclose(out2, ref2, atol=1e-2, rtol=1e-2), (
        float(jnp.max(jnp.abs(out2 - ref2))))

    print("KERNEL_OK")
</pallas_src>

<mosaic_0001>
module attributes {stable_mosaic.version = 11 : i64} {
  func.func @mlp_kernel(%arg0: i32, %arg1: memref<128x128xf32, #tpu.memory_space<vmem>>, %arg2: memref<128x128xbf16, #tpu.memory_space<vmem>>, %arg3: memref<1x128xf32, #tpu.memory_space<vmem>>, %arg4: memref<128x128xbf16, #tpu.memory_space<vmem>>, %arg5: memref<1x128xf32, #tpu.memory_space<vmem>>, %arg6: memref<128x64xbf16, #tpu.memory_space<vmem>>, %arg7: memref<1x64xf32, #tpu.memory_space<vmem>>, %arg8: memref<64x32xbf16, #tpu.memory_space<vmem>>, %arg9: memref<1x32xf32, #tpu.memory_space<vmem>>, %arg10: memref<32x128xbf16, #tpu.memory_space<vmem>>, %arg11: memref<1x128xf32, #tpu.memory_space<vmem>>, %arg12: memref<128x128xf32, #tpu.memory_space<vmem>>) attributes {dimension_semantics = [#tpu.dimension_semantics<parallel>], iteration_bounds = array<i64: 2>, scalar_prefetch = 0 : i64, scratch_operands = 0 : i64, tpu.core_type = #tpu.core_type<tc>, window_params = [{transform_indices = @transform_0, window_bounds = array<i64: 128, 128>}, {pipeline_mode = #tpu.pipeline_mode<synchronous>, transform_indices = @transform_1, window_bounds = array<i64: 128, 128>}, {pipeline_mode = #tpu.pipeline_mode<synchronous>, transform_indices = @transform_2, window_bounds = array<i64: 1, 128>}, {pipeline_mode = #tpu.pipeline_mode<synchronous>, transform_indices = @transform_3, window_bounds = array<i64: 128, 128>}, {pipeline_mode = #tpu.pipeline_mode<synchronous>, transform_indices = @transform_4, window_bounds = array<i64: 1, 128>}, {pipeline_mode = #tpu.pipeline_mode<synchronous>, transform_indices = @transform_5, window_bounds = array<i64: 128, 64>}, {pipeline_mode = #tpu.pipeline_mode<synchronous>, transform_indices = @transform_6, window_bounds = array<i64: 1, 64>}, {pipeline_mode = #tpu.pipeline_mode<synchronous>, transform_indices = @transform_7, window_bounds = array<i64: 64, 32>}, {pipeline_mode = #tpu.pipeline_mode<synchronous>, transform_indices = @transform_8, window_bounds = array<i64: 1, 32>}, {pipeline_mode = #tpu.pipeline_mode<synchronous>, transform_indices = @transform_9, window_bounds = array<i64: 32, 128>}, {pipeline_mode = #tpu.pipeline_mode<synchronous>, transform_indices = @transform_10, window_bounds = array<i64: 1, 128>}, {transform_indices = @transform_11, window_bounds = array<i64: 128, 128>}]} {
    %c0 = arith.constant 0 : index
    %c0_0 = arith.constant 0 : index
    %0 = vector.load %arg1[%c0, %c0_0] : memref<128x128xf32, #tpu.memory_space<vmem>>, vector<128x128xf32>
    %1 = arith.truncf %0 : vector<128x128xf32> to vector<128x128xbf16>
    %c0_1 = arith.constant 0 : index
    %c0_2 = arith.constant 0 : index
    %2 = vector.load %arg2[%c0_1, %c0_2] : memref<128x128xbf16, #tpu.memory_space<vmem>>, vector<128x128xbf16>
    %cst = arith.constant dense<0.000000e+00> : vector<128x128xf32>
    %3 = tpu.matmul %1, %2, %cst {dimension_numbers = #tpu.dot_dimension_numbers<[1], [0], [0], [1], [0, 0, 1, 1], [], []>} : vector<128x128xbf16>, vector<128x128xbf16>, vector<128x128xf32> -> vector<128x128xf32>
    %c0_3 = arith.constant 0 : index
    %c0_4 = arith.constant 0 : index
    %4 = vector.load %arg3[%c0_3, %c0_4] : memref<1x128xf32, #tpu.memory_space<vmem>>, vector<1x128xf32>
    %5 = vector.broadcast %4 : vector<1x128xf32> to vector<128x128xf32>
    %6 = arith.addf %3, %5 : vector<128x128xf32>
    %cst_5 = arith.constant 0.000000e+00 : f32
    %7 = vector.broadcast %cst_5 : f32 to vector<128x128xf32>
    %8 = arith.maximumf %6, %7 : vector<128x128xf32>
    %9 = arith.truncf %8 : vector<128x128xf32> to vector<128x128xbf16>
    %c0_6 = arith.constant 0 : index
    %c0_7 = arith.constant 0 : index
    %10 = vector.load %arg4[%c0_6, %c0_7] : memref<128x128xbf16, #tpu.memory_space<vmem>>, vector<128x128xbf16>
    %cst_8 = arith.constant dense<0.000000e+00> : vector<128x128xf32>
    %11 = tpu.matmul %9, %10, %cst_8 {dimension_numbers = #tpu.dot_dimension_numbers<[1], [0], [0], [1], [0, 0, 1, 1], [], []>} : vector<128x128xbf16>, vector<128x128xbf16>, vector<128x128xf32> -> vector<128x128xf32>
    %c0_9 = arith.constant 0 : index
    %c0_10 = arith.constant 0 : index
    %12 = vector.load %arg5[%c0_9, %c0_10] : memref<1x128xf32, #tpu.memory_space<vmem>>, vector<1x128xf32>
    %13 = vector.broadcast %12 : vector<1x128xf32> to vector<128x128xf32>
    %14 = arith.addf %11, %13 : vector<128x128xf32>
    %cst_11 = arith.constant 0.000000e+00 : f32
    %15 = vector.broadcast %cst_11 : f32 to vector<128x128xf32>
    %16 = arith.maximumf %14, %15 : vector<128x128xf32>
    %17 = arith.truncf %16 : vector<128x128xf32> to vector<128x128xbf16>
    %c0_12 = arith.constant 0 : index
    %c0_13 = arith.constant 0 : index
    %18 = vector.load %arg6[%c0_12, %c0_13] : memref<128x64xbf16, #tpu.memory_space<vmem>>, vector<128x64xbf16>
    %cst_14 = arith.constant dense<0.000000e+00> : vector<128x64xf32>
    %19 = tpu.matmul %17, %18, %cst_14 {dimension_numbers = #tpu.dot_dimension_numbers<[1], [0], [0], [1], [0, 0, 1, 1], [], []>} : vector<128x128xbf16>, vector<128x64xbf16>, vector<128x64xf32> -> vector<128x64xf32>
    %c0_15 = arith.constant 0 : index
    %c0_16 = arith.constant 0 : index
    %20 = vector.load %arg7[%c0_15, %c0_16] : memref<1x64xf32, #tpu.memory_space<vmem>>, vector<1x64xf32>
    %21 = vector.broadcast %20 : vector<1x64xf32> to vector<128x64xf32>
    %22 = arith.addf %19, %21 : vector<128x64xf32>
    %cst_17 = arith.constant 0.000000e+00 : f32
    %23 = vector.broadcast %cst_17 : f32 to vector<128x64xf32>
    %24 = arith.maximumf %22, %23 : vector<128x64xf32>
    %25 = arith.truncf %24 : vector<128x64xf32> to vector<128x64xbf16>
    %c0_18 = arith.constant 0 : index
    %c0_19 = arith.constant 0 : index
    %26 = vector.load %arg8[%c0_18, %c0_19] : memref<64x32xbf16, #tpu.memory_space<vmem>>, vector<64x32xbf16>
    %cst_20 = arith.constant dense<0.000000e+00> : vector<128x32xf32>
    %27 = tpu.matmul %25, %26, %cst_20 {dimension_numbers = #tpu.dot_dimension_numbers<[1], [0], [0], [1], [0, 0, 1, 1], [], []>} : vector<128x64xbf16>, vector<64x32xbf16>, vector<128x32xf32> -> vector<128x32xf32>
    %c0_21 = arith.constant 0 : index
    %c0_22 = arith.constant 0 : index
    %28 = vector.load %arg9[%c0_21, %c0_22] : memref<1x32xf32, #tpu.memory_space<vmem>>, vector<1x32xf32>
    %29 = vector.broadcast %28 : vector<1x32xf32> to vector<128x32xf32>
    %30 = arith.addf %27, %29 : vector<128x32xf32>
    %cst_23 = arith.constant 0.000000e+00 : f32
    %31 = vector.broadcast %cst_23 : f32 to vector<128x32xf32>
    %32 = arith.maximumf %30, %31 : vector<128x32xf32>
    %33 = arith.truncf %32 : vector<128x32xf32> to vector<128x32xbf16>
    %c0_24 = arith.constant 0 : index
    %c0_25 = arith.constant 0 : index
    %34 = vector.load %arg10[%c0_24, %c0_25] : memref<32x128xbf16, #tpu.memory_space<vmem>>, vector<32x128xbf16>
    %cst_26 = arith.constant dense<0.000000e+00> : vector<128x128xf32>
    %35 = tpu.matmul %33, %34, %cst_26 {dimension_numbers = #tpu.dot_dimension_numbers<[1], [0], [0], [1], [0, 0, 1, 1], [], []>} : vector<128x32xbf16>, vector<32x128xbf16>, vector<128x128xf32> -> vector<128x128xf32>
    %c0_27 = arith.constant 0 : index
    %c0_28 = arith.constant 0 : index
    %36 = vector.load %arg11[%c0_27, %c0_28] : memref<1x128xf32, #tpu.memory_space<vmem>>, vector<1x128xf32>
    %37 = vector.broadcast %36 : vector<1x128xf32> to vector<128x128xf32>
    %38 = arith.addf %35, %37 : vector<128x128xf32>
    %c0_29 = arith.constant 0 : index
    %c0_30 = arith.constant 0 : index
    %39 = vector.load %arg12[%c0_29, %c0_30] : memref<128x128xf32, #tpu.memory_space<vmem>>, vector<128x128xf32>
    tpu.vector_store %arg12[%c0_29, %c0_30], %38 {strides = array<i32>} : memref<128x128xf32, #tpu.memory_space<vmem>>, vector<128x128xf32>,
    return
  }
  func.func @transform_0(%arg0: i32) -> (i32, i32) {
    %c0_i32 = arith.constant 0 : i32
    %c0_i32_0 = arith.constant 0 : i32
    return %arg0, %c0_i32 : i32, i32
  }
  func.func @transform_1(%arg0: i32) -> (i32, i32) {
    %c0_i32 = arith.constant 0 : i32
    %c0_i32_0 = arith.constant 0 : i32
    %c0_i32_1 = arith.constant 0 : i32
    return %c0_i32, %c0_i32_0 : i32, i32
  }
  func.func @transform_2(%arg0: i32) -> (i32, i32) {
    %c0_i32 = arith.constant 0 : i32
    %c0_i32_0 = arith.constant 0 : i32
    %c0_i32_1 = arith.constant 0 : i32
    return %c0_i32, %c0_i32_0 : i32, i32
  }
  func.func @transform_3(%arg0: i32) -> (i32, i32) {
    %c0_i32 = arith.constant 0 : i32
    %c0_i32_0 = arith.constant 0 : i32
    %c0_i32_1 = arith.constant 0 : i32
    return %c0_i32, %c0_i32_0 : i32, i32
  }
  func.func @transform_4(%arg0: i32) -> (i32, i32) {
    %c0_i32 = arith.constant 0 : i32
    %c0_i32_0 = arith.constant 0 : i32
    %c0_i32_1 = arith.constant 0 : i32
    return %c0_i32, %c0_i32_0 : i32, i32
  }
  func.func @transform_5(%arg0: i32) -> (i32, i32) {
    %c0_i32 = arith.constant 0 : i32
    %c0_i32_0 = arith.constant 0 : i32
    %c0_i32_1 = arith.constant 0 : i32
    return %c0_i32, %c0_i32_0 : i32, i32
  }
  func.func @transform_6(%arg0: i32) -> (i32, i32) {
    %c0_i32 = arith.constant 0 : i32
    %c0_i32_0 = arith.constant 0 : i32
    %c0_i32_1 = arith.constant 0 : i32
    return %c0_i32, %c0_i32_0 : i32, i32
  }
  func.func @transform_7(%arg0: i32) -> (i32, i32) {
    %c0_i32 = arith.constant 0 : i32
    %c0_i32_0 = arith.constant 0 : i32
    %c0_i32_1 = arith.constant 0 : i32
    return %c0_i32, %c0_i32_0 : i32, i32
  }
  func.func @transform_8(%arg0: i32) -> (i32, i32) {
    %c0_i32 = arith.constant 0 : i32
    %c0_i32_0 = arith.constant 0 : i32
    %c0_i32_1 = arith.constant 0 : i32
    return %c0_i32, %c0_i32_0 : i32, i32
  }
  func.func @transform_9(%arg0: i32) -> (i32, i32) {
    %c0_i32 = arith.constant 0 : i32
    %c0_i32_0 = arith.constant 0 : i32
    %c0_i32_1 = arith.constant 0 : i32
    return %c0_i32, %c0_i32_0 : i32, i32
  }
  func.func @transform_10(%arg0: i32) -> (i32, i32) {
    %c0_i32 = arith.constant 0 : i32
    %c0_i32_0 = arith.constant 0 : i32
    %c0_i32_1 = arith.constant 0 : i32
    return %c0_i32, %c0_i32_0 : i32, i32
  }
  func.func @transform_11(%arg0: i32) -> (i32, i32) {
    %c0_i32 = arith.constant 0 : i32
    %c0_i32_0 = arith.constant 0 : i32
    return %arg0, %c0_i32 : i32, i32
  }
}

</mosaic_0001>

<llo_original>
// kernel: tpu_custom_call.1
$region0: #{tpu_custom_call.1}
  #allocation0 [shape = 'u32[]', space=smem, size = 0x4, offset = 0x4, fixed_abs, tag = 'smem constant byte address 0x4 - core index']
  #allocation1 [shape = 'u32[72,128]{1,0:T(1,128)}', space=vmem, size = 0x9000, scoped, tag = 'internal scratch']
  %s0 = inlined_call_operand.hbm [shape: f32[256,128], index: 0, kind: input, shape index: {}]
  %s1 = inlined_call_operand.vmem [shape: bf16[128,128], index: 1, kind: input, shape index: {}]
  %s2 = inlined_call_operand.vmem [shape: f32[1,128], index: 2, kind: input, shape index: {}]
  %s3 = inlined_call_operand.vmem [shape: bf16[128,128], index: 3, kind: input, shape index: {}]
  %s4 = inlined_call_operand.vmem [shape: f32[1,128], index: 4, kind: input, shape index: {}]
  %s5 = inlined_call_operand.vmem [shape: bf16[128,64], index: 5, kind: input, shape index: {}]
  %s6 = inlined_call_operand.vmem [shape: f32[1,64], index: 6, kind: input, shape index: {}]
  %s7 = inlined_call_operand.vmem [shape: bf16[64,32], index: 7, kind: input, shape index: {}]
  %s8 = inlined_call_operand.vmem [shape: f32[1,32], index: 8, kind: input, shape index: {}]
  %s9 = inlined_call_operand.vmem [shape: bf16[32,128], index: 9, kind: input, shape index: {}]
  %s10 = inlined_call_operand.vmem [shape: f32[1,128], index: 10, kind: input, shape index: {}]
  %s11 = inlined_call_operand.hbm [shape: f32[256,128], index: 11, kind: output, shape index: {}]
  %s12 = sld [smem:[#allocation0]]
  $region81: #{tpu_custom_call.1} parent=0
    _
  %s14 = ssub.s32 1, %s12
  %s15 = scalar_select 0, %s14, %s12
  $region1: #{tpu_custom_call.1} parent=0
    #allocation2 [shape = 'u8[131072]{0}', space=vmem, size = 0x20000, scoped, tag = 'input window, operand 0']
    #allocation3 [shape = 's32[2]{0}', space=sflag, size = 0x8, scoped, tag = 'scoped memory for tpu_custom_call.1']
    #allocation4 [shape = 's32[2]{0}', space=sflag, size = 0x8, scoped, tag = 'scoped memory for tpu_custom_call.1']
    #allocation5 [shape = 'u8[131072]{0}', space=vmem, size = 0x20000, scoped, tag = 'output window, operand 0']
    %16 = vsyncpa [#allocation3], 0
    %s17 = scalar_lea.sflag [#allocation3], 1
    %18 = vsyncpa %s17, 0
    %19 = vsyncpa [#allocation4], 0
    %s20 = scalar_lea.sflag [#allocation4], 1
    %21 = vsyncpa %s20, 0
    loop: start=0, step=1, limit=4
    $region2: #{tpu_custom_call.1} parent=1 // loop_pre_header
      _
    $region3: #{tpu_custom_call.1} parent=1 // loop_header
      %s23 = sphi 0, %s27
      %p24 = scmp.ge.s32.totalorder %s23, 4
      %s33 = sphi 0, %s35
      %s36 = sphi 0, %s33
      %s37 = sphi 0, %s36
      %s53 = sphi 0, %s37
      %s57 = sphi 0, %s57
      %s59 = sphi 0, %s57
      %s60 = sphi 0, %s59
      %s74 = sphi 0, %s60
      %s78 = sphi 0, %s78
      %s80 = sphi 0, %s78
      %s81 = sphi 0, %s80
      %s95 = sphi 0, %s81
      %s99 = sphi 0, %s99
      %s101 = sphi 0, %s99
      %s102 = sphi 0, %s101
      %s116 = sphi 0, %s102
      %s120 = sphi 0, %s120
      %s122 = sphi 0, %s120
      %s123 = sphi 0, %s122
      %s137 = sphi 0, %s123
      %s141 = sphi 0, %s141
      %s143 = sphi 0, %s141
      %s144 = sphi 0, %s143
      %s158 = sphi 0, %s144
      %s162 = sphi 0, %s162
      %s164 = sphi 0, %s162
      %s165 = sphi 0, %s164
      %s179 = sphi 0, %s165
      %s183 = sphi 0, %s183
      %s185 = sphi 0, %s183
      %s186 = sphi 0, %s185
      %s200 = sphi 0, %s186
      %s204 = sphi 0, %s204
      %s206 = sphi 0, %s204
      %s207 = sphi 0, %s206
      %s221 = sphi 0, %s207
      %s225 = sphi 0, %s225
      %s227 = sphi 0, %s225
      %s228 = sphi 0, %s227
      %s242 = sphi 0, %s228
      %s246 = sphi 0, %s246
      %s248 = sphi 0, %s246
      %s249 = sphi 0, %s248
      %s263 = sphi 0, %s249
      %s269 = sphi 0, %s271
      %s272 = sphi 0, %s269
      %s273 = sphi 0, %s272
      %s289 = sphi 0, %s273
    $region4: #{tpu_custom_call.1} parent=1 // loop_header_branch
      %26 = sbr.rel (%p24) target = $region8
    $region5: #{tpu_custom_call.1} parent=1 // loop_body
      %s28 = ssub.s32 %s23, 1
      %s29 = ssub.s32 %s23, 2
      %s30 = sadd.s32 %s23, 1
      %s31 = ssub.s32 %s23, %s30
      %p32 = scmp.eq.s32.totalorder %s31, 0
      %s34 = sadd.s32 %s33, 1
      %s35 = scalar_select %p32, %s33, %s34
      %p38 = pneg %p32
      %p39 = scmp.eq.s32.totalorder %s23, 1
      %p40 = por %p38, %p39
      %p41 = scmp.ne.s32.totalorder %s33, %s36
      %p42 = scmp.eq.s32.totalorder %s23, 0
      %p43 = por %p41, %p42
      %p44 = scmp.ne.s32.totalorder %s33, %s36
      %p45 = scmp.eq.s32.totalorder %s28, 1
      %p46 = por %p44, %p45
      %p47 = scmp.ne.s32.totalorder %s36, %s37
      %p48 = scmp.eq.s32.totalorder %s28, 0
      %p49 = por %p47, %p48
      %p50 = scmp.ne.s32.totalorder %s36, %s37
      %p51 = scmp.eq.s32.totalorder %s29, 1
      %p52 = por %p50, %p51
      %p54 = scmp.ne.s32.totalorder %s37, %s53
      %p55 = scmp.eq.s32.totalorder %s29, 0
      %p56 = por %p54, %p55
      %s58 = sadd.s32 %s57, 1
      %p61 = scmp.eq.s32.totalorder %s23, 1
      %p62 = scmp.ne.s32.totalorder %s57, %s59
      %p63 = scmp.eq.s32.totalorder %s23, 0
      %p64 = por %p62, %p63
      %p65 = scmp.ne.s32.totalorder %s57, %s59
      %p66 = scmp.eq.s32.totalorder %s28, 1
      %p67 = por %p65, %p66
      %p68 = scmp.ne.s32.totalorder %s59, %s60
      %p69 = scmp.eq.s32.totalorder %s28, 0
      %p70 = por %p68, %p69
      %p71 = scmp.ne.s32.totalorder %s59, %s60
      %p72 = scmp.eq.s32.totalorder %s29, 1
      %p73 = por %p71, %p72
      %p75 = scmp.ne.s32.totalorder %s60, %s74
      %p76 = scmp.eq.s32.totalorder %s29, 0
      %p77 = por %p75, %p76
      %s79 = sadd.s32 %s78, 1
      %p82 = scmp.eq.s32.totalorder %s23, 1
      %p83 = scmp.ne.s32.totalorder %s78, %s80
      %p84 = scmp.eq.s32.totalorder %s23, 0
      %p85 = por %p83, %p84
      %p86 = scmp.ne.s32.totalorder %s78, %s80
      %p87 = scmp.eq.s32.totalorder %s28, 1
      %p88 = por %p86, %p87
      %p89 = scmp.ne.s32.totalorder %s80, %s81
      %p90 = scmp.eq.s32.totalorder %s28, 0
      %p91 = por %p89, %p90
      %p92 = scmp.ne.s32.totalorder %s80, %s81
      %p93 = scmp.eq.s32.totalorder %s29, 1
      %p94 = por %p92, %p93
      %p96 = scmp.ne.s32.totalorder %s81, %s95
      %p97 = scmp.eq.s32.totalorder %s29, 0
      %p98 = por %p96, %p97
      %s100 = sadd.s32 %s99, 1
      %p103 = scmp.eq.s32.totalorder %s23, 1
      %p104 = scmp.ne.s32.totalorder %s99, %s101
      %p105 = scmp.eq.s32.totalorder %s23, 0
      %p106 = por %p104, %p105
      %p107 = scmp.ne.s32.totalorder %s99, %s101
      %p108 = scmp.eq.s32.totalorder %s28, 1
      %p109 = por %p107, %p108
      %p110 = scmp.ne.s32.totalorder %s101, %s102
      %p111 = scmp.eq.s32.totalorder %s28, 0
      %p112 = por %p110, %p111
      %p113 = scmp.ne.s32.totalorder %s101, %s102
      %p114 = scmp.eq.s32.totalorder %s29, 1
      %p115 = por %p113, %p114
      %p117 = scmp.ne.s32.totalorder %s102, %s116
      %p118 = scmp.eq.s32.totalorder %s29, 0
      %p119 = por %p117, %p118
      %s121 = sadd.s32 %s120, 1
      %p124 = scmp.eq.s32.totalorder %s23, 1
      %p125 = scmp.ne.s32.totalorder %s120, %s122
      %p126 = scmp.eq.s32.totalorder %s23, 0
      %p127 = por %p125, %p126
      %p128 = scmp.ne.s32.totalorder %s120, %s122
      %p129 = scmp.eq.s32.totalorder %s28, 1
      %p130 = por %p128, %p129
      %p131 = scmp.ne.s32.totalorder %s122, %s123
      %p132 = scmp.eq.s32.totalorder %s28, 0
      %p133 = por %p131, %p132
      %p134 = scmp.ne.s32.totalorder %s122, %s123
      %p135 = scmp.eq.s32.totalorder %s29, 1
      %p136 = por %p134, %p135
      %p138 = scmp.ne.s32.totalorder %s123, %s137
      %p139 = scmp.eq.s32.totalorder %s29, 0
      %p140 = por %p138, %p139
      %s142 = sadd.s32 %s141, 1
      %p145 = scmp.eq.s32.totalorder %s23, 1
      %p146 = scmp.ne.s32.totalorder %s141, %s143
      %p147 = scmp.eq.s32.totalorder %s23, 0
      %p148 = por %p146, %p147
      %p149 = scmp.ne.s32.totalorder %s141, %s143
      %p150 = scmp.eq.s32.totalorder %s28, 1
      %p151 = por %p149, %p150
      %p152 = scmp.ne.s32.totalorder %s143, %s144
      %p153 = scmp.eq.s32.totalorder %s28, 0
      %p154 = por %p152, %p153
      %p155 = scmp.ne.s32.totalorder %s143, %s144
      %p156 = scmp.eq.s32.totalorder %s29, 1
      %p157 = por %p155, %p156
      %p159 = scmp.ne.s32.totalorder %s144, %s158
      %p160 = scmp.eq.s32.totalorder %s29, 0
      %p161 = por %p159, %p160
      %s163 = sadd.s32 %s162, 1
      %p166 = scmp.eq.s32.totalorder %s23, 1
      %p167 = scmp.ne.s32.totalorder %s162, %s164
      %p168 = scmp.eq.s32.totalorder %s23, 0
      %p169 = por %p167, %p168
      %p170 = scmp.ne.s32.totalorder %s162, %s164
      %p171 = scmp.eq.s32.totalorder %s28, 1
      %p172 = por %p170, %p171
      %p173 = scmp.ne.s32.totalorder %s164, %s165
      %p174 = scmp.eq.s32.totalorder %s28, 0
      %p175 = por %p173, %p174
      %p176 = scmp.ne.s32.totalorder %s164, %s165
      %p177 = scmp.eq.s32.totalorder %s29, 1
      %p178 = por %p176, %p177
      %p180 = scmp.ne.s32.totalorder %s165, %s179
      %p181 = scmp.eq.s32.totalorder %s29, 0
      %p182 = por %p180, %p181
      %s184 = sadd.s32 %s183, 1
      %p187 = scmp.eq.s32.totalorder %s23, 1
      %p188 = scmp.ne.s32.totalorder %s183, %s185
      %p189 = scmp.eq.s32.totalorder %s23, 0
      %p190 = por %p188, %p189
      %p191 = scmp.ne.s32.totalorder %s183, %s185
      %p192 = scmp.eq.s32.totalorder %s28, 1
      %p193 = por %p191, %p192
      %p194 = scmp.ne.s32.totalorder %s185, %s186
      %p195 = scmp.eq.s32.totalorder %s28, 0
      %p196 = por %p194, %p195
      %p197 = scmp.ne.s32.totalorder %s185, %s186
      %p198 = scmp.eq.s32.totalorder %s29, 1
      %p199 = por %p197, %p198
      %p201 = scmp.ne.s32.totalorder %s186, %s200
      %p202 = scmp.eq.s32.totalorder %s29, 0
      %p203 = por %p201, %p202
      %s205 = sadd.s32 %s204, 1
      %p208 = scmp.eq.s32.totalorder %s23, 1
      %p209 = scmp.ne.s32.totalorder %s204, %s206
      %p210 = scmp.eq.s32.totalorder %s23, 0
      %p211 = por %p209, %p210
      %p212 = scmp.ne.s32.totalorder %s204, %s206
      %p213 = scmp.eq.s32.totalorder %s28, 1
      %p214 = por %p212, %p213
      %p215 = scmp.ne.s32.totalorder %s206, %s207
      %p216 = scmp.eq.s32.totalorder %s28, 0
      %p217 = por %p215, %p216
      %p218 = scmp.ne.s32.totalorder %s206, %s207
      %p219 = scmp.eq.s32.totalorder %s29, 1
      %p220 = por %p218, %p219
      %p222 = scmp.ne.s32.totalorder %s207, %s221
      %p223 = scmp.eq.s32.totalorder %s29, 0
      %p224 = por %p222, %p223
      %s226 = sadd.s32 %s225, 1
      %p229 = scmp.eq.s32.totalorder %s23, 1
      %p230 = scmp.ne.s32.totalorder %s225, %s227
      %p231 = scmp.eq.s32.totalorder %s23, 0
      %p232 = por %p230, %p231
      %p233 = scmp.ne.s32.totalorder %s225, %s227
      %p234 = scmp.eq.s32.totalorder %s28, 1
      %p235 = por %p233, %p234
      %p236 = scmp.ne.s32.totalorder %s227, %s228
      %p237 = scmp.eq.s32.totalorder %s28, 0
      %p238 = por %p236, %p237
      %p239 = scmp.ne.s32.totalorder %s227, %s228
      %p240 = scmp.eq.s32.totalorder %s29, 1
      %p241 = por %p239, %p240
      %p243 = scmp.ne.s32.totalorder %s228, %s242
      %p244 = scmp.eq.s32.totalorder %s29, 0
      %p245 = por %p243, %p244
      %s247 = sadd.s32 %s246, 1
      %p250 = scmp.eq.s32.totalorder %s23, 1
      %p251 = scmp.ne.s32.totalorder %s246, %s248
      %p252 = scmp.eq.s32.totalorder %s23, 0
      %p253 = por %p251, %p252
      %p254 = scmp.ne.s32.totalorder %s246, %s248
      %p255 = scmp.eq.s32.totalorder %s28, 1
      %p256 = por %p254, %p255
      %p257 = scmp.ne.s32.totalorder %s248, %s249
      %p258 = scmp.eq.s32.totalorder %s28, 0
      %p259 = por %p257, %p258
      %p260 = scmp.ne.s32.totalorder %s248, %s249
      %p261 = scmp.eq.s32.totalorder %s29, 1
      %p262 = por %p260, %p261
      %p264 = scmp.ne.s32.totalorder %s249, %s263
      %p265 = scmp.eq.s32.totalorder %s29, 0
      %p266 = por %p264, %p265
      %s267 = ssub.s32 %s23, %s30
      %p268 = scmp.eq.s32.totalorder %s267, 0
      %s270 = sadd.s32 %s269, 1
      %s271 = scalar_select %p268, %s269, %s270
      %p274 = pneg %p268
      %p275 = scmp.eq.s32.totalorder %s23, 1
      %p276 = por %p274, %p275
      %p277 = scmp.ne.s32.totalorder %s269, %s272
      %p278 = scmp.eq.s32.totalorder %s23, 0
      %p279 = por %p277, %p278
      %p280 = scmp.ne.s32.totalorder %s269, %s272
      %p281 = scmp.eq.s32.totalorder %s28, 1
      %p282 = por %p280, %p281
      %p283 = scmp.ne.s32.totalorder %s272, %s273
      %p284 = scmp.eq.s32.totalorder %s28, 0
      %p285 = por %p283, %p284
      %p286 = scmp.ne.s32.totalorder %s272, %s273
      %p287 = scmp.eq.s32.totalorder %s29, 1
      %p288 = por %p286, %p287
      %p290 = scmp.ne.s32.totalorder %s273, %s289
      %p291 = scmp.eq.s32.totalorder %s29, 0
      %p292 = por %p290, %p291
      %p293 = scmp.le.s32.totalorder 1, %s23
      %p294 = scmp.lt.s32.totalorder %s23, 3
      %p295 = pnand %p293, %p294
      %p296 = pneg %p295
      // Predicated region
      $region9: #{tpu_custom_call.1} parent=5 // pred_check
        _
      $region10: #{tpu_custom_call.1} parent=5 // pred_check_branch
        %298 = sbr.rel (%p295) target = $region12
      $region11: #{tpu_custom_call.1} parent=5 // pred_region
        %s299 = ssub.s32 %s23, 1
        // Predicated region
        $region13: #{tpu_custom_call.1} parent=11 // pred_check
          %p300 = pneg %p70
        $region14: #{tpu_custom_call.1} parent=11 // pred_check_branch
          %302 = sbr.rel (%p300) target = $region16
        $region15: #{tpu_custom_call.1} parent=11 // pred_region
          _
        $region16: #{tpu_custom_call.1} parent=11 // pred_fallthru
          _
        // Predicated region
        $region17: #{tpu_custom_call.1} parent=11 // pred_check
          %p303 = pneg %p91
        $region18: #{tpu_custom_call.1} parent=11 // pred_check_branch
          %305 = sbr.rel (%p303) target = $region20
        $region19: #{tpu_custom_call.1} parent=11 // pred_region
          _
        $region20: #{tpu_custom_call.1} parent=11 // pred_fallthru
          _
        // Predicated region
        $region21: #{tpu_custom_call.1} parent=11 // pred_check
          %p306 = pneg %p112
        $region22: #{tpu_custom_call.1} parent=11 // pred_check_branch
          %308 = sbr.rel (%p306) target = $region24
        $region23: #{tpu_custom_call.1} parent=11 // pred_region
          _
        $region24: #{tpu_custom_call.1} parent=11 // pred_fallthru
          _
        // Predicated region
        $region25: #{tpu_custom_call.1} parent=11 // pred_check
          %p309 = pneg %p133
        $region26: #{tpu_custom_call.1} parent=11 // pred_check_branch
          %311 = sbr.rel (%p309) target = $region28
        $region27: #{tpu_custom_call.1} parent=11 // pred_region
          _
        $region28: #{tpu_custom_call.1} parent=11 // pred_fallthru
          _
        // Predicated region
        $region29: #{tpu_custom_call.1} parent=11 // pred_check
          %p312 = pneg %p154
        $region30: #{tpu_custom_call.1} parent=11 // pred_check_branch
          %314 = sbr.rel (%p312) target = $region32
        $region31: #{tpu_custom_call.1} parent=11 // pred_region
          _
        $region32: #{tpu_custom_call.1} parent=11 // pred_fallthru
          _
        // Predicated region
        $region33: #{tpu_custom_call.1} parent=11 // pred_check
          %p315 = pneg %p175
        $region34: #{tpu_custom_call.1} parent=11 // pred_check_branch
          %317 = sbr.rel (%p315) target = $region36
        $region35: #{tpu_custom_call.1} parent=11 // pred_region
          _
        $region36: #{tpu_custom_call.1} parent=11 // pred_fallthru
          _
        // Predicated region
        $region37: #{tpu_custom_call.1} parent=11 // pred_check
          %p318 = pneg %p196
        $region38: #{tpu_custom_call.1} parent=11 // pred_check_branch
          %320 = sbr.rel (%p318) target = $region40
        $region39: #{tpu_custom_call.1} parent=11 // pred_region
          _
        $region40: #{tpu_custom_call.1} parent=11 // pred_fallthru
          _
        // Predicated region
        $region41: #{tpu_custom_call.1} parent=11 // pred_check
          %p321 = pneg %p217
        $region42: #{tpu_custom_call.1} parent=11 // pred_check_branch
          %323 = sbr.rel (%p321) target = $region44
        $region43: #{tpu_custom_call.1} parent=11 // pred_region
          _
        $region44: #{tpu_custom_call.1} parent=11 // pred_fallthru
          _
        // Predicated region
        $region45: #{tpu_custom_call.1} parent=11 // pred_check
          %p324 = pneg %p238
        $region46: #{tpu_custom_call.1} parent=11 // pred_check_branch
          %326 = sbr.rel (%p324) target = $region48
        $region47: #{tpu_custom_call.1} parent=11 // pred_region
          _
        $region48: #{tpu_custom_call.1} parent=11 // pred_fallthru
          _
        // Predicated region
        $region49: #{tpu_custom_call.1} parent=11 // pred_check
          %p327 = pneg %p259
        $region50: #{tpu_custom_call.1} parent=11 // pred_check_branch
          %329 = sbr.rel (%p327) target = $region52
        $region51: #{tpu_custom_call.1} parent=11 // pred_region
          _
        $region52: #{tpu_custom_call.1} parent=11 // pred_fallthru
          _
      $region12: #{tpu_custom_call.1} parent=5 // pred_fallthru
        _
      %p330 = scmp.lt.s32.totalorder %s23, 2
      // Predicated region
      $region53: #{tpu_custom_call.1} parent=5 // pred_check
        %p331 = pneg %p330
      $region54: #{tpu_custom_call.1} parent=5 // pred_check_branch
        %333 = sbr.rel (%p331) target = $region56
      $region55: #{tpu_custom_call.1} parent=5 // pred_region
        // Predicated region
        $region57: #{tpu_custom_call.1} parent=55 // pred_check
          %p334 = pneg %p43
        $region58: #{tpu_custom_call.1} parent=55 // pred_check_branch
          %336 = sbr.rel (%p334) target = $region60
        $region59: #{tpu_custom_call.1} parent=55 // pred_region
          %s337 = sand.u32 %s33, 1
          %s338 = scalar_lea.sflag [#allocation3], %s337
          %s339 = sand.u32 %s33, 1
          %s340 = smul.addr %s339, 128
          %s341 = scalar_lea.vmem [#allocation2], %s340
          %s342 = smul.u32 16, %s23
          %344 = vsyncadd %s338, 0
          %s345 = smul.addr %s342, 8
          %s346 = scalar_lea.hbm %s0, %s345
          %s347 = sshll.u32 %s346, 4
          %s348 = int_to_ptr.hbm [resolvable:$true] %s347
          %s349 = sshll.u32 %s341, 4
          %s350 = int_to_ptr.vmem [resolvable:$true] %s349
          %355 = dma.hbm_to_vmem [thread:$0]  %s348, 2048, %s350, %s338, 128, 128, 8
        $region60: #{tpu_custom_call.1} parent=55 // pred_fallthru
          _
      $region56: #{tpu_custom_call.1} parent=5 // pred_fallthru
        _
      %p356 = scmp.le.s32.totalorder 1, %s23
      %p357 = scmp.lt.s32.totalorder %s23, 3
      %p358 = pnand %p356, %p357
      %p359 = pneg %p358
      // Predicated region
      $region61: #{tpu_custom_call.1} parent=5 // pred_check
        _
      $region62: #{tpu_custom_call.1} parent=5 // pred_check_branch
        %361 = sbr.rel (%p358) target = $region64
      $region63: #{tpu_custom_call.1} parent=5 // pred_region
        %s362 = ssub.s32 %s23, 1
        %s363 = sand.u32 %s36, 1
        %s364 = scalar_lea.sflag [#allocation3], %s363
        %s365 = sand.u32 %s36, 1
        %s366 = smul.addr %s365, 128
        %s367 = scalar_lea.vmem [#allocation2], %s366
        // Predicated region
        $region65: #{tpu_custom_call.1} parent=63 // pred_check
          %p368 = pneg %p49
        $region66: #{tpu_custom_call.1} parent=63 // pred_check_branch
          %370 = sbr.rel (%p368) target = $region68
        $region67: #{tpu_custom_call.1} parent=63 // pred_region
          %372 = dma.done %s364, 2048
        $region68: #{tpu_custom_call.1} parent=63 // pred_fallthru
          _
        %s373 = sand.u32 %s36, 1
        %s374 = scalar_lea.sflag [#allocation3], %s373
        %s375 = sand.u32 %s36, 1
        %s376 = smul.addr %s375, 128
        %s377 = scalar_lea.vmem [#allocation2], %s376
        %p378 = pneg %p49
        %p379 = pneg %p46
        %p380 = pneg %p70
        %p381 = pneg %p67
        %p382 = pneg %p91
        %p383 = pneg %p88
        %p384 = pneg %p112
        %p385 = pneg %p109
        %p386 = pneg %p133
        %p387 = pneg %p130
        %p388 = pneg %p154
        %p389 = pneg %p151
        %p390 = pneg %p175
        %p391 = pneg %p172
        %p392 = pneg %p196
        %p393 = pneg %p193
        %p394 = pneg %p217
        %p395 = pneg %p214
        %p396 = pneg %p238
        %p397 = pneg %p235
        %p398 = pneg %p259
        %p399 = pneg %p256
        %p400 = pneg %p285
        %p401 = pneg %p282
        %s402 = sand.u32 %s272, 1
        %s403 = scalar_lea.sflag [#allocation4], %s402
        %s404 = sand.u32 %s272, 1
        %s405 = smul.addr %s404, 128
        %s406 = scalar_lea.vmem [#allocation5], %s405
        %s407 = smul.u32 16, %s28
        %s408 = smul.u32 16, %s28
        %v410 = vld [vmem:[%s367] sm:$0xff]
        %v411 = vld [vmem:[%s367 + $0x8] sm:$0xff]
        %v412 = vld [vmem:[%s367 + $0x10] sm:$0xff]
        %v413 = vld [vmem:[%s367 + $0x18] sm:$0xff]
        %v414 = vld [vmem:[%s367 + $0x20] sm:$0xff]
        %v415 = vld [vmem:[%s367 + $0x28] sm:$0xff]
        %v416 = vld [vmem:[%s367 + $0x30] sm:$0xff]
        %v417 = vld [vmem:[%s367 + $0x38] sm:$0xff]
        %v418 = vld [vmem:[%s367 + $0x40] sm:$0xff]
        %v419 = vld [vmem:[%s367 + $0x48] sm:$0xff]
        %v420 = vld [vmem:[%s367 + $0x50] sm:$0xff]
        %v421 = vld [vmem:[%s367 + $0x58] sm:$0xff]
        %v422 = vld [vmem:[%s367 + $0x60] sm:$0xff]
        %v423 = vld [vmem:[%s367 + $0x68] sm:$0xff]
        %v424 = vld [vmem:[%s367 + $0x70] sm:$0xff]
        %v425 = vld [vmem:[%s367 + $0x78] sm:$0xff]
        %v426 = vpack.c.bf16 %v411, %v410
        %v427 = vpack.c.bf16 %v413, %v412
        %v428 = vpack.c.bf16 %v415, %v414
        %v429 = vpack.c.bf16 %v417, %v416
        %v430 = vpack.c.bf16 %v419, %v418
        %v431 = vpack.c.bf16 %v421, %v420
        %v432 = vpack.c.bf16 %v423, %v422
        %v433 = vpack.c.bf16 %v425, %v424
        %v434 = vld [vmem:[%s1] sm:$0xf]
        %v435 = vld [vmem:[%s1 + $0x4] sm:$0xf]
        %v436 = vld [vmem:[%s1 + $0x8] sm:$0xf]
        %v437 = vld [vmem:[%s1 + $0xc] sm:$0xf]
        %v438 = vld [vmem:[%s1 + $0x10] sm:$0xf]
        %v439 = vld [vmem:[%s1 + $0x14] sm:$0xf]
        %v440 = vld [vmem:[%s1 + $0x18] sm:$0xf]
        %v441 = vld [vmem:[%s1 + $0x1c] sm:$0xf]
        %v442 = vld [vmem:[%s1 + $0x20] sm:$0xf]
        %v443 = vld [vmem:[%s1 + $0x24] sm:$0xf]
        %v444 = vld [vmem:[%s1 + $0x28] sm:$0xf]
        %v445 = vld [vmem:[%s1 + $0x2c] sm:$0xf]
        %v446 = vld [vmem:[%s1 + $0x30] sm:$0xf]
        %v447 = vld [vmem:[%s1 + $0x34] sm:$0xf]
        %v448 = vld [vmem:[%s1 + $0x38] sm:$0xf]
        %v449 = vld [vmem:[%s1 + $0x3c] sm:$0xf]
        %v450 = vld [vmem:[%s2] sm:$0x1]
        %v452 = vperm.slane %v450, 0
        %v470 = vunpack.c.l.b16 %v434
        %v471 = vunpack.c.l.b16 %v435
        %v472 = vunpack.c.l.b16 %v436
        %v473 = vunpack.c.l.b16 %v437
        %v474 = vunpack.c.l.b16 %v438
        %v475 = vunpack.c.l.b16 %v439
        %v476 = vunpack.c.l.b16 %v440
        %v477 = vunpack.c.l.b16 %v441
        %v478 = vunpack.c.l.b16 %v442
        %v479 = vunpack.c.l.b16 %v443
        %v480 = vunpack.c.l.b16 %v444
        %v481 = vunpack.c.l.b16 %v445
        %v482 = vunpack.c.l.b16 %v446
        %v483 = vunpack.c.l.b16 %v447
        %v484 = vunpack.c.l.b16 %v448
        %v485 = vunpack.c.l.b16 %v449
        %v486 = vpack.c.b16 %v471, %v470
        %v487 = vpack.c.b16 %v473, %v472
        %v488 = vpack.c.b16 %v475, %v474
        %v489 = vpack.c.b16 %v477, %v476
        %v490 = vpack.c.b16 %v479, %v478
        %v491 = vpack.c.b16 %v481, %v480
        %v492 = vpack.c.b16 %v483, %v482
        %v493 = vpack.c.b16 %v485, %v484
        %502 = vmatpush.bf16.msra.mxu0 %v493
        %503 = vmatpush.bf16.msra.mxu0 %v492
        %504 = vmatpush.bf16.msra.mxu0 %v491
        %505 = vmatpush.bf16.msra.mxu0 %v490
        %506 = vmatpush.bf16.msra.mxu0 %v489
        %507 = vmatpush.bf16.msra.mxu0 %v488
        %508 = vmatpush.bf16.msra.mxu0 %v487
        %509 = vmatpush.bf16.msra.mxu0 %v486
        %510 = vmatmul.bf16.gmra.mxu0 %v426
        %v511 = vpop.f32.mrf.mxu0
        %v512 = vadd.f32 %v452, %v511
        %v513 = vpop.f32.mrf.mxu0
        %v514 = vadd.f32 %v452, %v513
        %515 = vmatmul.bf16.gmra.mxu0 %v427
        %v516 = vpop.f32.mrf.mxu0
        %v517 = vadd.f32 %v452, %v516
        %v518 = vpop.f32.mrf.mxu0
        %v519 = vadd.f32 %v452, %v518
        %520 = vmatmul.bf16.gmra.mxu0 %v428
        %v521 = vpop.f32.mrf.mxu0
        %v522 = vadd.f32 %v452, %v521
        %v523 = vpop.f32.mrf.mxu0
        %v524 = vadd.f32 %v452, %v523
        %525 = vmatmul.bf16.gmra.mxu0 %v429
        %v526 = vpop.f32.mrf.mxu0
        %v527 = vadd.f32 %v452, %v526
        %v528 = vpop.f32.mrf.mxu0
        %v529 = vadd.f32 %v452, %v528
        %530 = vmatmul.bf16.gmra.mxu0 %v430
        %v531 = vpop.f32.mrf.mxu0
        %v532 = vadd.f32 %v452, %v531
        %v533 = vpop.f32.mrf.mxu0
        %v534 = vadd.f32 %v452, %v533
        %535 = vmatmul.bf16.gmra.mxu0 %v431
        %v536 = vpop.f32.mrf.mxu0
        %v537 = vadd.f32 %v452, %v536
        %v538 = vpop.f32.mrf.mxu0
        %v539 = vadd.f32 %v452, %v538
        %540 = vmatmul.bf16.gmra.mxu0 %v432
        %v541 = vpop.f32.mrf.mxu0
        %v542 = vadd.f32 %v452, %v541
        %v543 = vpop.f32.mrf.mxu0
        %v544 = vadd.f32 %v452, %v543
        %545 = vmatmul.bf16.gmra.mxu0 %v433
        %v546 = vpop.f32.mrf.mxu0
        %v547 = vadd.f32 %v452, %v546
        %v548 = vpop.f32.mrf.mxu0
        %v549 = vadd.f32 %v452, %v548
        %550 = vdwg.mxu0
        %v551 = vmax.f32 %v512, 0.0
        %v552 = vmax.f32 %v514, 0.0
        %v553 = vmax.f32 %v517, 0.0
        %v554 = vmax.f32 %v519, 0.0
        %v555 = vmax.f32 %v522, 0.0
        %v556 = vmax.f32 %v524, 0.0
        %v557 = vmax.f32 %v527, 0.0
        %v558 = vmax.f32 %v529, 0.0
        %v559 = vmax.f32 %v532, 0.0
        %v560 = vmax.f32 %v534, 0.0
        %v561 = vmax.f32 %v537, 0.0
        %v562 = vmax.f32 %v539, 0.0
        %v563 = vmax.f32 %v542, 0.0
        %v564 = vmax.f32 %v544, 0.0
        %v565 = vmax.f32 %v547, 0.0
        %v566 = vmax.f32 %v549, 0.0
        %v567 = vpack.c.bf16 %v552, %v551
        %v568 = vpack.c.bf16 %v554, %v553
        %v569 = vpack.c.bf16 %v556, %v555
        %v570 = vpack.c.bf16 %v558, %v557
        %v571 = vpack.c.bf16 %v560, %v559
        %v572 = vpack.c.bf16 %v562, %v561
        %v573 = vpack.c.bf16 %v564, %v563
        %v574 = vpack.c.bf16 %v566, %v565
        %v575 = vld [vmem:[%s3] sm:$0xf]
        %v576 = vld [vmem:[%s3 + $0x4] sm:$0xf]
        %v577 = vld [vmem:[%s3 + $0x8] sm:$0xf]
        %v578 = vld [vmem:[%s3 + $0xc] sm:$0xf]
        %v579 = vld [vmem:[%s3 + $0x10] sm:$0xf]
        %v580 = vld [vmem:[%s3 + $0x14] sm:$0xf]
        %v581 = vld [vmem:[%s3 + $0x18] sm:$0xf]
        %v582 = vld [vmem:[%s3 + $0x1c] sm:$0xf]
        %v583 = vld [vmem:[%s3 + $0x20] sm:$0xf]
        %v584 = vld [vmem:[%s3 + $0x24] sm:$0xf]
        %v585 = vld [vmem:[%s3 + $0x28] sm:$0xf]
        %v586 = vld [vmem:[%s3 + $0x2c] sm:$0xf]
        %v587 = vld [vmem:[%s3 + $0x30] sm:$0xf]
        %v588 = vld [vmem:[%s3 + $0x34] sm:$0xf]
        %v589 = vld [vmem:[%s3 + $0x38] sm:$0xf]
        %v590 = vld [vmem:[%s3 + $0x3c] sm:$0xf]
        %v591 = vld [vmem:[%s4] sm:$0x1]
        %v593 = vperm.slane %v591, 0
        %v611 = vunpack.c.l.b16 %v575
        %v612 = vunpack.c.l.b16 %v576
        %v613 = vunpack.c.l.b16 %v577
        %v614 = vunpack.c.l.b16 %v578
        %v615 = vunpack.c.l.b16 %v579
        %v616 = vunpack.c.l.b16 %v580
        %v617 = vunpack.c.l.b16 %v581
        %v618 = vunpack.c.l.b16 %v582
        %v619 = vunpack.c.l.b16 %v583
        %v620 = vunpack.c.l.b16 %v584
        %v621 = vunpack.c.l.b16 %v585
        %v622 = vunpack.c.l.b16 %v586
        %v623 = vunpack.c.l.b16 %v587
        %v624 = vunpack.c.l.b16 %v588
        %v625 = vunpack.c.l.b16 %v589
        %v626 = vunpack.c.l.b16 %v590
        %v627 = vpack.c.b16 %v612, %v611
        %v628 = vpack.c.b16 %v614, %v613
        %v629 = vpack.c.b16 %v616, %v615
        %v630 = vpack.c.b16 %v618, %v617
        %v631 = vpack.c.b16 %v620, %v619
        %v632 = vpack.c.b16 %v622, %v621
        %v633 = vpack.c.b16 %v624, %v623
        %v634 = vpack.c.b16 %v626, %v625
        %643 = vmatpush.bf16.msra.mxu0 %v634
        %644 = vmatpush.bf16.msra.mxu0 %v633
        %645 = vmatpush.bf16.msra.mxu0 %v632
        %646 = vmatpush.bf16.msra.mxu0 %v631
        %647 = vmatpush.bf16.msra.mxu0 %v630
        %648 = vmatpush.bf16.msra.mxu0 %v629
        %649 = vmatpush.bf16.msra.mxu0 %v628
        %650 = vmatpush.bf16.msra.mxu0 %v627
        %651 = vmatmul.bf16.gmra.mxu0 %v567
        %v652 = vpop.f32.mrf.mxu0
        %v653 = vadd.f32 %v593, %v652
        %v654 = vpop.f32.mrf.mxu0
        %v655 = vadd.f32 %v593, %v654
        %656 = vmatmul.bf16.gmra.mxu0 %v568
        %v657 = vpop.f32.mrf.mxu0
        %v658 = vadd.f32 %v593, %v657
        %v659 = vpop.f32.mrf.mxu0
        %v660 = vadd.f32 %v593, %v659
        %661 = vmatmul.bf16.gmra.mxu0 %v569
        %v662 = vpop.f32.mrf.mxu0
        %v663 = vadd.f32 %v593, %v662
        %v664 = vpop.f32.mrf.mxu0
        %v665 = vadd.f32 %v593, %v664
        %666 = vmatmul.bf16.gmra.mxu0 %v570
        %v667 = vpop.f32.mrf.mxu0
        %v668 = vadd.f32 %v593, %v667
        %v669 = vpop.f32.mrf.mxu0
        %v670 = vadd.f32 %v593, %v669
        %671 = vmatmul.bf16.gmra.mxu0 %v571
        %v672 = vpop.f32.mrf.mxu0
        %v673 = vadd.f32 %v593, %v672
        %v674 = vpop.f32.mrf.mxu0
        %v675 = vadd.f32 %v593, %v674
        %676 = vmatmul.bf16.gmra.mxu0 %v572
        %v677 = vpop.f32.mrf.mxu0
        %v678 = vadd.f32 %v593, %v677
        %v679 = vpop.f32.mrf.mxu0
        %v680 = vadd.f32 %v593, %v679
        %681 = vmatmul.bf16.gmra.mxu0 %v573
        %v682 = vpop.f32.mrf.mxu0
        %v683 = vadd.f32 %v593, %v682
        %v684 = vpop.f32.mrf.mxu0
        %v685 = vadd.f32 %v593, %v684
        %686 = vmatmul.bf16.gmra.mxu0 %v574
        %v687 = vpop.f32.mrf.mxu0
        %v688 = vadd.f32 %v593, %v687
        %v689 = vpop.f32.mrf.mxu0
        %v690 = vadd.f32 %v593, %v689
        %691 = vdwg.mxu0
        %v692 = vmax.f32 %v653, 0.0
        %v693 = vmax.f32 %v655, 0.0
        %v694 = vmax.f32 %v658, 0.0
        %v695 = vmax.f32 %v660, 0.0
        %v696 = vmax.f32 %v663, 0.0
        %v697 = vmax.f32 %v665, 0.0
        %v698 = vmax.f32 %v668, 0.0
        %v699 = vmax.f32 %v670, 0.0
        %v700 = vmax.f32 %v673, 0.0
        %v701 = vmax.f32 %v675, 0.0
        %v702 = vmax.f32 %v678, 0.0
        %v703 = vmax.f32 %v680, 0.0
        %v704 = vmax.f32 %v683, 0.0
        %v705 = vmax.f32 %v685, 0.0
        %v706 = vmax.f32 %v688, 0.0
        %v707 = vmax.f32 %v690, 0.0
        %v708 = vpack.c.bf16 %v693, %v692
        %v709 = vpack.c.bf16 %v695, %v694
        %v710 = vpack.c.bf16 %v697, %v696
        %v711 = vpack.c.bf16 %v699, %v698
        %v712 = vpack.c.bf16 %v701, %v700
        %v713 = vpack.c.bf16 %v703, %v702
        %v714 = vpack.c.bf16 %v705, %v704
        %v715 = vpack.c.bf16 %v707, %v706
        %v716 = vld [vmem:[%s5] sm:$0xf]
        %v717 = vld [vmem:[%s5 + $0x4] sm:$0xf]
        %v718 = vld [vmem:[%s5 + $0x8] sm:$0xf]
        %v719 = vld [vmem:[%s5 + $0xc] sm:$0xf]
        %v720 = vld [vmem:[%s5 + $0x10] sm:$0xf]
        %v721 = vld [vmem:[%s5 + $0x14] sm:$0xf]
        %v722 = vld [vmem:[%s5 + $0x18] sm:$0xf]
        %v723 = vld [vmem:[%s5 + $0x1c] sm:$0xf]
        %v724 = vld [vmem:[%s5 + $0x20] sm:$0xf]
        %v725 = vld [vmem:[%s5 + $0x24] sm:$0xf]
        %v726 = vld [vmem:[%s5 + $0x28] sm:$0xf]
        %v727 = vld [vmem:[%s5 + $0x2c] sm:$0xf]
        %v728 = vld [vmem:[%s5 + $0x30] sm:$0xf]
        %v729 = vld [vmem:[%s5 + $0x34] sm:$0xf]
        %v730 = vld [vmem:[%s5 + $0x38] sm:$0xf]
        %v731 = vld [vmem:[%s5 + $0x3c] sm:$0xf]
        %v732 = vld [vmem:[%s6] sm:$0x1]
        %v734 = vperm.slane %v732, 0
        %v752 = vunpack.c.l.b16 %v716
        %v753 = vunpack.c.l.b16 %v717
        %v754 = vunpack.c.l.b16 %v718
        %v755 = vunpack.c.l.b16 %v719
        %v756 = vunpack.c.l.b16 %v720
        %v757 = vunpack.c.l.b16 %v721
        %v758 = vunpack.c.l.b16 %v722
        %v759 = vunpack.c.l.b16 %v723
        %v760 = vunpack.c.l.b16 %v724
        %v761 = vunpack.c.l.b16 %v725
        %v762 = vunpack.c.l.b16 %v726
        %v763 = vunpack.c.l.b16 %v727
        %v764 = vunpack.c.l.b16 %v728
        %v765 = vunpack.c.l.b16 %v729
        %v766 = vunpack.c.l.b16 %v730
        %v767 = vunpack.c.l.b16 %v731
        %v768 = vpack.c.b16 %v753, %v752
        %v769 = vpack.c.b16 %v755, %v754
        %v770 = vpack.c.b16 %v757, %v756
        %v771 = vpack.c.b16 %v759, %v758
        %v772 = vpack.c.b16 %v761, %v760
        %v773 = vpack.c.b16 %v763, %v762
        %v774 = vpack.c.b16 %v765, %v764
        %v775 = vpack.c.b16 %v767, %v766
        %784 = vmatpush.bf16.msra.mxu0 %v775
        %785 = vmatpush.bf16.msra.mxu0 %v774
        %786 = vmatpush.bf16.msra.mxu0 %v773
        %787 = vmatpush.bf16.msra.mxu0 %v772
        %788 = vmatpush.bf16.msra.mxu0 %v771
        %789 = vmatpush.bf16.msra.mxu0 %v770
        %790 = vmatpush.bf16.msra.mxu0 %v769
        %791 = vmatpush.bf16.msra.mxu0 %v768
        %792 = vmatmul.bf16.gmra.mxu0 %v708
        %v793 = vpop.f32.mrf.mxu0
        %v794 = vadd.f32 %v734, %v793
        %v795 = vpop.f32.mrf.mxu0
        %v796 = vadd.f32 %v734, %v795
        %797 = vmatmul.bf16.gmra.mxu0 %v709
        %v798 = vpop.f32.mrf.mxu0
        %v799 = vadd.f32 %v734, %v798
        %v800 = vpop.f32.mrf.mxu0
        %v801 = vadd.f32 %v734, %v800
        %802 = vmatmul.bf16.gmra.mxu0 %v710
        %v803 = vpop.f32.mrf.mxu0
        %v804 = vadd.f32 %v734, %v803
        %v805 = vpop.f32.mrf.mxu0
        %v806 = vadd.f32 %v734, %v805
        %807 = vmatmul.bf16.gmra.mxu0 %v711
        %v808 = vpop.f32.mrf.mxu0
        %v809 = vadd.f32 %v734, %v808
        %v810 = vpop.f32.mrf.mxu0
        %v811 = vadd.f32 %v734, %v810
        %812 = vmatmul.bf16.gmra.mxu0 %v712
        %v813 = vpop.f32.mrf.mxu0
        %v814 = vadd.f32 %v734, %v813
        %v815 = vpop.f32.mrf.mxu0
        %v816 = vadd.f32 %v734, %v815
        %817 = vmatmul.bf16.gmra.mxu0 %v713
        %v818 = vpop.f32.mrf.mxu0
        %v819 = vadd.f32 %v734, %v818
        %v820 = vpop.f32.mrf.mxu0
        %v821 = vadd.f32 %v734, %v820
        %822 = vmatmul.bf16.gmra.mxu0 %v714
        %v823 = vpop.f32.mrf.mxu0
        %v824 = vadd.f32 %v734, %v823
        %v825 = vpop.f32.mrf.mxu0
        %v826 = vadd.f32 %v734, %v825
        %827 = vmatmul.bf16.gmra.mxu0 %v715
        %v828 = vpop.f32.mrf.mxu0
        %v829 = vadd.f32 %v734, %v828
        %v830 = vpop.f32.mrf.mxu0
        %v831 = vadd.f32 %v734, %v830
        %832 = vdwg.mxu0
        %v833 = vmax.f32 %v794, 0.0
        %v834 = vmax.f32 %v796, 0.0
        %v835 = vmax.f32 %v799, 0.0
        %v836 = vmax.f32 %v801, 0.0
        %v837 = vmax.f32 %v804, 0.0
        %v838 = vmax.f32 %v806, 0.0
        %v839 = vmax.f32 %v809, 0.0
        %v840 = vmax.f32 %v811, 0.0
        %v841 = vmax.f32 %v814, 0.0
        %v842 = vmax.f32 %v816, 0.0
        %v843 = vmax.f32 %v819, 0.0
        %v844 = vmax.f32 %v821, 0.0
        %v845 = vmax.f32 %v824, 0.0
        %v846 = vmax.f32 %v826, 0.0
        %v847 = vmax.f32 %v829, 0.0
        %v848 = vmax.f32 %v831, 0.0
        %v849 = vpack.c.bf16 %v834, %v833
        %v850 = vpack.c.bf16 %v836, %v835
        %v851 = vpack.c.bf16 %v838, %v837
        %v852 = vpack.c.bf16 %v840, %v839
        %v853 = vpack.c.bf16 %v842, %v841
        %v854 = vpack.c.bf16 %v844, %v843
        %v855 = vpack.c.bf16 %v846, %v845
        %v856 = vpack.c.bf16 %v848, %v847
        %v857 = vld [vmem:[%s7] sm:$0xf]
        %v858 = vld [vmem:[%s7 + $0x4] sm:$0xf]
        %v859 = vld [vmem:[%s7 + $0x8] sm:$0xf]
        %v860 = vld [vmem:[%s7 + $0xc] sm:$0xf]
        %v861 = vld [vmem:[%s7 + $0x10] sm:$0xf]
        %v862 = vld [vmem:[%s7 + $0x14] sm:$0xf]
        %v863 = vld [vmem:[%s7 + $0x18] sm:$0xf]
        %v864 = vld [vmem:[%s7 + $0x1c] sm:$0xf]
        %v865 = vld [vmem:[%s8] sm:$0x1]
        %v867 = vperm.slane %v865, 0
        %v877 = vunpack.c.l.b16 %v857
        %v878 = vunpack.c.l.b16 %v858
        %v879 = vunpack.c.l.b16 %v859
        %v880 = vunpack.c.l.b16 %v860
        %v881 = vunpack.c.l.b16 %v861
        %v882 = vunpack.c.l.b16 %v862
        %v883 = vunpack.c.l.b16 %v863
        %v884 = vunpack.c.l.b16 %v864
        %v885 = vpack.c.b16 %v878, %v877
        %v886 = vpack.c.b16 %v880, %v879
        %v887 = vpack.c.b16 %v882, %v881
        %v888 = vpack.c.b16 %v884, %v883
        %vm893 = vcmask 523264
        %v895 = vsel %vm893, %v849, 0
        %v898 = vsel %vm893, %v850, 0
        %v901 = vsel %vm893, %v851, 0
        %v904 = vsel %vm893, %v852, 0
        %v907 = vsel %vm893, %v853, 0
        %v910 = vsel %vm893, %v854, 0
        %v913 = vsel %vm893, %v855, 0
        %v916 = vsel %vm893, %v856, 0
        %918 = vmatpush.bf16.msra.mxu0 0
        %919 = vmatpush.bf16.msra.mxu0 0
        %920 = vmatpush.bf16.msra.mxu0 0
        %921 = vmatpush.bf16.msra.mxu0 0
        %922 = vmatpush.bf16.msra.mxu0 %v888
        %923 = vmatpush.bf16.msra.mxu0 %v887
        %924 = vmatpush.bf16.msra.mxu0 %v886
        %925 = vmatpush.bf16.msra.mxu0 %v885
        %926 = vmatmul.bf16.gmra.mxu0 %v895
        %v927 = vpop.f32.mrf.mxu0
        %v928 = vadd.f32 %v867, %v927
        %v929 = vpop.f32.mrf.mxu0
        %v930 = vadd.f32 %v867, %v929
        %931 = vmatmul.bf16.gmra.mxu0 %v898
        %v932 = vpop.f32.mrf.mxu0
        %v933 = vadd.f32 %v867, %v932
        %v934 = vpop.f32.mrf.mxu0
        %v935 = vadd.f32 %v867, %v934
        %936 = vmatmul.bf16.gmra.mxu0 %v901
        %v937 = vpop.f32.mrf.mxu0
        %v938 = vadd.f32 %v867, %v937
        %v939 = vpop.f32.mrf.mxu0
        %v940 = vadd.f32 %v867, %v939
        %941 = vmatmul.bf16.gmra.mxu0 %v904
        %v942 = vpop.f32.mrf.mxu0
        %v943 = vadd.f32 %v867, %v942
        %v944 = vpop.f32.mrf.mxu0
        %v945 = vadd.f32 %v867, %v944
        %946 = vmatmul.bf16.gmra.mxu0 %v907
        %v947 = vpop.f32.mrf.mxu0
        %v948 = vadd.f32 %v867, %v947
        %v949 = vpop.f32.mrf.mxu0
        %v950 = vadd.f32 %v867, %v949
        %951 = vmatmul.bf16.gmra.mxu0 %v910
        %v952 = vpop.f32.mrf.mxu0
        %v953 = vadd.f32 %v867, %v952
        %v954 = vpop.f32.mrf.mxu0
        %v955 = vadd.f32 %v867, %v954
        %956 = vmatmul.bf16.gmra.mxu0 %v913
        %v957 = vpop.f32.mrf.mxu0
        %v958 = vadd.f32 %v867, %v957
        %v959 = vpop.f32.mrf.mxu0
        %v960 = vadd.f32 %v867, %v959
        %961 = vmatmul.bf16.gmra.mxu0 %v916
        %v962 = vpop.f32.mrf.mxu0
        %v963 = vadd.f32 %v867, %v962
        %v964 = vpop.f32.mrf.mxu0
        %v965 = vadd.f32 %v867, %v964
        %966 = vdwg.mxu0
        %v967 = vmax.f32 %v928, 0.0
        %v968 = vmax.f32 %v930, 0.0
        %v969 = vmax.f32 %v933, 0.0
        %v970 = vmax.f32 %v935, 0.0
        %v971 = vmax.f32 %v938, 0.0
        %v972 = vmax.f32 %v940, 0.0
        %v973 = vmax.f32 %v943, 0.0
        %v974 = vmax.f32 %v945, 0.0
        %v975 = vmax.f32 %v948, 0.0
        %v976 = vmax.f32 %v950, 0.0
        %v977 = vmax.f32 %v953, 0.0
        %v978 = vmax.f32 %v955, 0.0
        %v979 = vmax.f32 %v958, 0.0
        %v980 = vmax.f32 %v960, 0.0
        %v981 = vmax.f32 %v963, 0.0
        %v982 = vmax.f32 %v965, 0.0
        %v983 = vpack.c.bf16 %v968, %v967
        %v984 = vpack.c.bf16 %v970, %v969
        %v985 = vpack.c.bf16 %v972, %v971
        %v986 = vpack.c.bf16 %v974, %v973
        %v987 = vpack.c.bf16 %v976, %v975
        %v988 = vpack.c.bf16 %v978, %v977
        %v989 = vpack.c.bf16 %v980, %v979
        %v990 = vpack.c.bf16 %v982, %v981
        %v991 = vld [vmem:[%s9] sm:$0xf]
        %v992 = vld [vmem:[%s9 + $0x4] sm:$0xf]
        %v993 = vld [vmem:[%s9 + $0x8] sm:$0xf]
        %v994 = vld [vmem:[%s9 + $0xc] sm:$0xf]
        %v995 = vld [vmem:[%s10] sm:$0x1]
        %v997 = vperm.slane %v995, 0
        %v1003 = vunpack.c.l.b16 %v991
        %v1004 = vunpack.c.l.b16 %v992
        %v1005 = vunpack.c.l.b16 %v993
        %v1006 = vunpack.c.l.b16 %v994
        %v1007 = vpack.c.b16 %v1004, %v1003
        %v1008 = vpack.c.b16 %v1006, %v1005
        %vm1011 = vcmask 261120
        %v1013 = vsel %vm1011, %v983, 0
        %v1016 = vsel %vm1011, %v984, 0
        %v1019 = vsel %vm1011, %v985, 0
        %v1022 = vsel %vm1011, %v986, 0
        %v1025 = vsel %vm1011, %v987, 0
        %v1028 = vsel %vm1011, %v988, 0
        %v1031 = vsel %vm1011, %v989, 0
        %v1034 = vsel %vm1011, %v990, 0
        %1036 = vmatpush.bf16.msra.mxu0 0
        %1037 = vmatpush.bf16.msra.mxu0 0
        %1038 = vmatpush.bf16.msra.mxu0 0
        %1039 = vmatpush.bf16.msra.mxu0 0
        %1040 = vmatpush.bf16.msra.mxu0 0
        %1041 = vmatpush.bf16.msra.mxu0 0
        %1042 = vmatpush.bf16.msra.mxu0 %v1008
        %1043 = vmatpush.bf16.msra.mxu0 %v1007
        %1044 = vmatmul.bf16.gmra.mxu0 %v1013
        %v1045 = vpop.f32.mrf.mxu0
        %v1046 = vadd.f32 %v997, %v1045
        %v1047 = vpop.f32.mrf.mxu0
        %v1048 = vadd.f32 %v997, %v1047
        %1049 = vmatmul.bf16.gmra.mxu0 %v1016
        %v1050 = vpop.f32.mrf.mxu0
        %v1051 = vadd.f32 %v997, %v1050
        %v1052 = vpop.f32.mrf.mxu0
        %v1053 = vadd.f32 %v997, %v1052
        %1054 = vmatmul.bf16.gmra.mxu0 %v1019
        %v1055 = vpop.f32.mrf.mxu0
        %v1056 = vadd.f32 %v997, %v1055
        %v1057 = vpop.f32.mrf.mxu0
        %v1058 = vadd.f32 %v997, %v1057
        %1059 = vmatmul.bf16.gmra.mxu0 %v1022
        %v1060 = vpop.f32.mrf.mxu0
        %v1061 = vadd.f32 %v997, %v1060
        %v1062 = vpop.f32.mrf.mxu0
        %v1063 = vadd.f32 %v997, %v1062
        %1064 = vmatmul.bf16.gmra.mxu0 %v1025
        %v1065 = vpop.f32.mrf.mxu0
        %v1066 = vadd.f32 %v997, %v1065
        %v1067 = vpop.f32.mrf.mxu0
        %v1068 = vadd.f32 %v997, %v1067
        %1069 = vmatmul.bf16.gmra.mxu0 %v1028
        %v1070 = vpop.f32.mrf.mxu0
        %v1071 = vadd.f32 %v997, %v1070
        %v1072 = vpop.f32.mrf.mxu0
        %v1073 = vadd.f32 %v997, %v1072
        %1074 = vmatmul.bf16.gmra.mxu0 %v1031
        %v1075 = vpop.f32.mrf.mxu0
        %v1076 = vadd.f32 %v997, %v1075
        %v1077 = vpop.f32.mrf.mxu0
        %v1078 = vadd.f32 %v997, %v1077
        %1079 = vmatmul.bf16.gmra.mxu0 %v1034
        %v1080 = vpop.f32.mrf.mxu0
        %v1081 = vadd.f32 %v997, %v1080
        %v1082 = vpop.f32.mrf.mxu0
        %v1083 = vadd.f32 %v997, %v1082
        %1084 = vdwg.mxu0
        %1085 = vst [vmem:[%s406] sm:$0xff] %v1046
        %1086 = vst [vmem:[%s406 + $0x8] sm:$0xff] %v1048
        %1087 = vst [vmem:[%s406 + $0x10] sm:$0xff] %v1051
        %1088 = vst [vmem:[%s406 + $0x18] sm:$0xff] %v1053
        %1089 = vst [vmem:[%s406 + $0x20] sm:$0xff] %v1056
        %1090 = vst [vmem:[%s406 + $0x28] sm:$0xff] %v1058
        %1091 = vst [vmem:[%s406 + $0x30] sm:$0xff] %v1061
        %1092 = vst [vmem:[%s406 + $0x38] sm:$0xff] %v1063
        %1093 = vst [vmem:[%s406 + $0x40] sm:$0xff] %v1066
        %1094 = vst [vmem:[%s406 + $0x48] sm:$0xff] %v1068
        %1095 = vst [vmem:[%s406 + $0x50] sm:$0xff] %v1071
        %1096 = vst [vmem:[%s406 + $0x58] sm:$0xff] %v1073
        %1097 = vst [vmem:[%s406 + $0x60] sm:$0xff] %v1076
        %1098 = vst [vmem:[%s406 + $0x68] sm:$0xff] %v1078
        %1099 = vst [vmem:[%s406 + $0x70] sm:$0xff] %v1081
        %1100 = vst [vmem:[%s406 + $0x78] sm:$0xff] %v1083
        %s1101 = sand.u32 %s272, 1
        %s1102 = scalar_lea.sflag [#allocation4], %s1101
        %s1103 = sand.u32 %s272, 1
        %s1104 = smul.addr %s1103, 128
        %s1105 = scalar_lea.vmem [#allocation5], %s1104
        // Predicated region
        $region69: #{tpu_custom_call.1} parent=63 // pred_check
          %p1106 = pneg %p282
        $region70: #{tpu_custom_call.1} parent=63 // pred_check_branch
          %1108 = sbr.rel (%p1106) target = $region72
        $region71: #{tpu_custom_call.1} parent=63 // pred_region
          %s1109 = smul.u32 16, %s28
          %1111 = vsyncadd %s1102, 0
          %s1112 = smul.addr %s1109, 8
          %s1113 = scalar_lea.hbm %s11, %s1112
          %s1114 = sshll.u32 %s1105, 4
          %s1115 = int_to_ptr.vmem [resolvable:$true] %s1114
          %s1116 = sshll.u32 %s1113, 4
          %s1117 = int_to_ptr.hbm [resolvable:$true] %s1116
          %1122 = dma.vmem_to_hbm [thread:$0]  %s1115, 2048, %s1117, %s1102, 128, 128, 8
        $region72: #{tpu_custom_call.1} parent=63 // pred_fallthru
          _
      $region64: #{tpu_custom_call.1} parent=5 // pred_fallthru
        _
      %p1123 = scmp.le.s32.totalorder 2, %s23
      // Predicated region
      $region73: #{tpu_custom_call.1} parent=5 // pred_check
        %p1124 = pneg %p1123
      $region74: #{tpu_custom_call.1} parent=5 // pred_check_branch
        %1126 = sbr.rel (%p1124) target = $region76
      $region75: #{tpu_custom_call.1} parent=5 // pred_region
        %s1127 = ssub.s32 %s23, 2
        // Predicated region
        $region77: #{tpu_custom_call.1} parent=75 // pred_check
          %p1128 = pneg %p288
        $region78: #{tpu_custom_call.1} parent=75 // pred_check_branch
          %1130 = sbr.rel (%p1128) target = $region80
        $region79: #{tpu_custom_call.1} parent=75 // pred_region
          %s1131 = sand.u32 %s273, 1
          %s1132 = scalar_lea.sflag [#allocation4], %s1131
          %s1133 = sand.u32 %s273, 1
          %s1134 = smul.addr %s1133, 128
          %s1135 = scalar_lea.vmem [#allocation5], %s1134
          %1137 = dma.done %s1132, 2048
        $region80: #{tpu_custom_call.1} parent=75 // pred_fallthru
          _
      $region76: #{tpu_custom_call.1} parent=5 // pred_fallthru
        _
    $region6: #{tpu_custom_call.1} parent=1 // loop_footer
      %s27 = sadd.s32 1, %s23
    $region7: #{tpu_custom_call.1} parent=1 // loop_footer_branch
      %22 = sbr.rel target = $region3
    $region8: #{tpu_custom_call.1} parent=1 // loop_exit
      _
    %1138 = vsyncpa [#allocation3], 1
    %s1139 = scalar_lea.sflag [#allocation3], 1
    %1140 = vsyncpa %s1139, 1
    %1141 = vsyncpa [#allocation4], 1
    %s1142 = scalar_lea.sflag [#allocation4], 1
    %1143 = vsyncpa %s1142, 1

</llo_original>
